<compile_context>
chip_gen: v7x
topology: tpu7x:2x2x1
jax: 0.10.0
libtpu: 0.0.40
codegen_flags: <defaults>
</compile_context>

<pallas_src>
import functools

import jax
import jax.numpy as jnp
from jax.experimental import pallas as pl
from jax.experimental.pallas import tpu as pltpu

_EPS = 1e-6        # F.pairwise_distance default eps
_LANES = 128
_SUBLANES = 8


def _cdiv(a, b):
    return -(-a // b)


def _chip_config():
    """Generation-dependent parallelism and VMEM budgets (safe fallbacks)."""
    try:
        kind = jax.devices()[0].device_kind.lower()
    except Exception:
        kind = ""
    if "v7" in kind or "7x" in kind:
        # v7x: 2 TensorCores, but only 64 MiB VMEM per TC -> conservative.
        return 2, 20 << 20, 48 << 20
    # v5e / v6e: single TensorCore, 128 MiB physical VMEM.
    return 1, 32 << 20, 64 << 20


def _contrastive_kernel(x1_ref, x2_ref, lbl_ref, out_ref, acc_ref, *, margin, batch):
    b = pl.program_id(1)              # inner "arbitrary" (reduction) axis
    nb = pl.num_programs(1)
    tb = x1_ref.shape[0]

    @pl.when(b == 0)
    def _():
        acc_ref[...] = jnp.zeros_like(acc_ref)

    # Squared distance / distance per row, accumulated in f32 regardless of
    # the HBM dtype of x1/x2 (bf16 inputs supported).
    x1 = x1_ref[...].astype(jnp.float32)
    x2 = x2_ref[...].astype(jnp.float32)
    diff = x1 - x2 + _EPS                                    # (tb, D)
    sq_sum = jnp.sum(diff * diff, axis=-1, keepdims=True)    # (tb, 1) == d^2
    dist = jnp.sqrt(sq_sum)                                  # (tb, 1)

    lbl = lbl_ref[...].astype(jnp.float32)                   # (tb, 1)
    hinge = jnp.maximum(margin - dist, 0.0)
    # Positive branch uses sq_sum directly (no sqrt->square round trip).
    per_row = (1.0 - lbl) * sq_sum + lbl * (hinge * hinge)   # (tb, 1)

    # Ragged final tile: zero contributions from rows >= batch. jnp.where is a
    # select, so garbage read from out-of-bounds rows cannot propagate.
    row_start = (pl.program_id(0) * nb + b) * tb
    rows = jax.lax.broadcasted_iota(jnp.int32, (tb, 1), 0) + row_start
    per_row = jnp.where(rows < batch, per_row, 0.0)

    # Vector accumulator: plain VALU add every step (no per-step scalar RMW).
    acc_ref[...] += per_row

    @pl.when(b == nb - 1)
    def _():
        # Single cross-sublane reduce, then one lane-dense (1, 8, 128) write
        # per parallel slice.
        out_ref[...] = jnp.full(out_ref.shape, jnp.sum(acc_ref[...]), jnp.float32)


def contrastive_loss(output1, output2, label, margin=2.0):
    """output1, output2: [B, D] float (f32 or bf16); label: [B] (0/1). Scalar f32 loss."""
    B, D = output1.shape
    itemsize = jnp.dtype(output1.dtype).itemsize

    npar, budget, vmem_limit = _chip_config()
    if B < 4 * _SUBLANES:
        npar = 1  # too small to split across cores

    # Steady-state VMEM bytes per batch row:
    #   x1,x2 blocks double-buffered (4 * D * itemsize)
    # + ~2 f32-sized block intermediates (diff, diff*diff)
    # + ~5 (tb, 1) vectors (label x2 buffers, accumulator, per-row temps),
    #   each padded to 128 lanes in VMEM -> 512 B/row.
    bytes_per_row = 4 * D * itemsize + 2 * D * 4 + 5 * 512
    tb_budget = max(1, budget // bytes_per_row)
    rows_per_slice = _cdiv(B, npar)
    tb = min(tb_budget, rows_per_slice)
    if tb >= B:
        # Whole batch fits one block; block dim == full array dim (exempt from
        # the 8-sublane divisibility rule).
        npar, tb, nb = 1, B, 1
    else:
        tb = max(_SUBLANES, (tb // _SUBLANES) * _SUBLANES)
        nb = _cdiv(rows_per_slice, tb)
    # Redundant tail tiles (possible when npar*nb*tb overshoots B) are clamped
    # onto the last real tile; the in-kernel row mask zeroes their contribution.
    last_tile = _cdiv(B, tb) - 1

    lbl2 = label.reshape(B, 1).astype(jnp.float32)

    def row_map(p, b):
        return (jnp.minimum(p * nb + b, last_tile), 0)

    kernel = functools.partial(_contrastive_kernel, margin=float(margin), batch=B)

    cost = pl.CostEstimate(
        flops=5 * B * D + 8 * B,
        transcendentals=B,
        bytes_accessed=2 * B * D * itemsize + B * 4 + npar * _SUBLANES * _LANES * 4,
    )

    partials = pl.pallas_call(
        kernel,
        out_shape=jax.ShapeDtypeStruct((npar, _SUBLANES, _LANES), jnp.float32),
        grid_spec=pltpu.PrefetchScalarGridSpec(
            num_scalar_prefetch=0,
            grid=(npar, nb),
            in_specs=[
                pl.BlockSpec((tb, D), row_map),
                pl.BlockSpec((tb, D), row_map),
                pl.BlockSpec((tb, 1), row_map),
            ],
            out_specs=pl.BlockSpec((1, _SUBLANES, _LANES), lambda p, b: (p, 0, 0)),
            scratch_shapes=[pltpu.VMEM((tb, 1), jnp.float32)],
        ),
        compiler_params=pltpu.CompilerParams(
            dimension_semantics=("parallel", "arbitrary"),
            vmem_limit_bytes=vmem_limit,
        ),
        cost_estimate=cost,
    )(output1, output2, lbl2)

    # Combine the per-core partial sums; mean over the true batch size.
    return jnp.sum(partials[:, 0, 0]) / B


def _reference(output1, output2, label, margin=2.0):
    d = jnp.sqrt(jnp.sum((output1 - output2 + _EPS) ** 2, axis=-1))
    y = label.astype(jnp.float32)
    return jnp.mean((1.0 - y) * d**2 + y * jnp.maximum(margin - d, 0.0) ** 2)


if __name__ == "__main__":
    key = jax.random.PRNGKey(0)
    k1, k2, k3 = jax.random.split(key, 3)

    B, D = 8, 32
    output1 = jax.random.normal(k1, (B, D), dtype=jnp.float32)
    output2 = jax.random.normal(k2, (B, D), dtype=jnp.float32)
    label = jax.random.bernoulli(k3, 0.5, (B,)).astype(jnp.float32)

    loss = jax.block_until_ready(contrastive_loss(output1, output2, label, margin=2.0))
    ref = _reference(output1, output2, label, margin=2.0)

    assert jnp.allclose(loss, ref, rtol=1e-5, atol=1e-5), (loss, ref)
    print("KERNEL_OK")
</pallas_src>

<mosaic_0001>
module attributes {stable_mosaic.version = 11 : i64} {
  func.func @_contrastive_kernel(%arg0: i32, %arg1: i32, %arg2: memref<8x32xf32, #tpu.memory_space<vmem>>, %arg3: memref<8x32xf32, #tpu.memory_space<vmem>>, %arg4: memref<8x1xf32, #tpu.memory_space<vmem>>, %arg5: memref<1x8x128xf32, #tpu.memory_space<vmem>>, %arg6: memref<8x1xf32, #tpu.memory_space<vmem>>) attributes {dimension_semantics = [#tpu.dimension_semantics<parallel>, #tpu.dimension_semantics<arbitrary>], iteration_bounds = array<i64: 1, 1>, scalar_prefetch = 0 : i64, scratch_operands = 1 : i64, tpu.core_type = #tpu.core_type<tc>, window_params = [{transform_indices = @transform_0, window_bounds = array<i64: 8, 32>}, {transform_indices = @transform_1, window_bounds = array<i64: 8, 32>}, {transform_indices = @transform_2, window_bounds = array<i64: 8, 1>}, {transform_indices = @transform_3, window_bounds = array<i64: 1, 8, 128>}]} {
    %c0_i32 = arith.constant 0 : i32
    %0 = arith.cmpi eq, %arg1, %c0_i32 : i32
    %1 = arith.extui %0 : i1 to i32
    %c0_i32_0 = arith.constant 0 : i32
    %2 = arith.cmpi ne, %1, %c0_i32_0 : i32
    scf.if %2 {
      %cst_18 = arith.constant 0.000000e+00 : f32
      %39 = vector.broadcast %cst_18 : f32 to vector<8x1xf32>
      %c0_19 = arith.constant 0 : index
      %c0_20 = arith.constant 0 : index
      %40 = vector.load %arg6[%c0_19, %c0_20] : memref<8x1xf32, #tpu.memory_space<vmem>>, vector<8x1xf32>
      tpu.vector_store %arg6[%c0_19, %c0_20], %39 {strides = array<i32>} : memref<8x1xf32, #tpu.memory_space<vmem>>, vector<8x1xf32>,
    } else {
    }
    %c0 = arith.constant 0 : index
    %c0_1 = arith.constant 0 : index
    %3 = vector.load %arg2[%c0, %c0_1] : memref<8x32xf32, #tpu.memory_space<vmem>>, vector<8x32xf32>
    %c0_2 = arith.constant 0 : index
    %c0_3 = arith.constant 0 : index
    %4 = vector.load %arg3[%c0_2, %c0_3] : memref<8x32xf32, #tpu.memory_space<vmem>>, vector<8x32xf32>
    %5 = arith.subf %3, %4 : vector<8x32xf32>
    %cst = arith.constant 9.99999997E-7 : f32
    %6 = vector.broadcast %cst : f32 to vector<8x32xf32>
    %7 = arith.addf %5, %6 : vector<8x32xf32>
    %8 = arith.mulf %7, %7 : vector<8x32xf32>
    %cst_4 = arith.constant dense<0.000000e+00> : vector<8xf32>
    %9 = vector.multi_reduction <add>, %8, %cst_4 [1] : vector<8x32xf32> to vector<8xf32>
    %10 = vector.shape_cast %9 : vector<8xf32> to vector<8x1xf32>
    %11 = math.sqrt %10 : vector<8x1xf32>
    %c0_5 = arith.constant 0 : index
    %c0_6 = arith.constant 0 : index
    %12 = vector.load %arg4[%c0_5, %c0_6] : memref<8x1xf32, #tpu.memory_space<vmem>>, vector<8x1xf32>
    %cst_7 = arith.constant 2.000000e+00 : f32
    %13 = vector.broadcast %cst_7 : f32 to vector<8x1xf32>
    %14 = arith.subf %13, %11 : vector<8x1xf32>
    %cst_8 = arith.constant 0.000000e+00 : f32
    %15 = vector.broadcast %cst_8 : f32 to vector<8x1xf32>
    %16 = arith.maximumf %14, %15 : vector<8x1xf32>
    %cst_9 = arith.constant 1.000000e+00 : f32
    %17 = vector.broadcast %cst_9 : f32 to vector<8x1xf32>
    %18 = arith.subf %17, %12 : vector<8x1xf32>
    %19 = arith.mulf %18, %10 : vector<8x1xf32>
    %20 = arith.mulf %16, %16 : vector<8x1xf32>
    %21 = arith.mulf %12, %20 : vector<8x1xf32>
    %22 = arith.addf %19, %21 : vector<8x1xf32>
    %c1_i32 = arith.constant 1 : i32
    %23 = arith.muli %arg0, %c1_i32 : i32
    %24 = arith.addi %23, %arg1 : i32
    %c8_i32 = arith.constant 8 : i32
    %25 = arith.muli %24, %c8_i32 : i32
    %26 = tpu.iota {dimensions = array<i32: 0>} : vector<8x1xi32>
    %27 = vector.broadcast %25 : i32 to vector<8x1xi32>
    %28 = arith.addi %26, %27 : vector<8x1xi32>
    %c8_i32_10 = arith.constant 8 : i32
    %29 = vector.broadcast %c8_i32_10 : i32 to vector<8x1xi32>
    %30 = arith.cmpi slt, %28, %29 : vector<8x1xi32>
    %cst_11 = arith.constant 0.000000e+00 : f32
    %31 = vector.broadcast %cst_11 : f32 to vector<8x1xf32>
    %32 = arith.select %30, %22, %31 : vector<8x1xi1>, vector<8x1xf32>
    %c0_12 = arith.constant 0 : index
    %c0_13 = arith.constant 0 : index
    %33 = vector.load %arg6[%c0_12, %c0_13] : memref<8x1xf32, #tpu.memory_space<vmem>>, vector<8x1xf32>
    %34 = arith.addf %33, %32 : vector<8x1xf32>
    %c0_14 = arith.constant 0 : index
    %c0_15 = arith.constant 0 : index
    %35 = vector.load %arg6[%c0_14, %c0_15] : memref<8x1xf32, #tpu.memory_space<vmem>>, vector<8x1xf32>
    tpu.vector_store %arg6[%c0_14, %c0_15], %34 {strides = array<i32>} : memref<8x1xf32, #tpu.memory_space<vmem>>, vector<8x1xf32>,
    %c0_i32_16 = arith.constant 0 : i32
    %36 = arith.cmpi eq, %arg1, %c0_i32_16 : i32
    %37 = arith.extui %36 : i1 to i32
    %c0_i32_17 = arith.constant 0 : i32
    %38 = arith.cmpi ne, %37, %c0_i32_17 : i32
    scf.if %38 {
      %c0_18 = arith.constant 0 : index
      %c0_19 = arith.constant 0 : index
      %39 = vector.load %arg6[%c0_18, %c0_19] : memref<8x1xf32, #tpu.memory_space<vmem>>, vector<8x1xf32>
      %40 = vector.shape_cast %39 : vector<8x1xf32> to vector<1x8x1xf32>
      %cst_20 = arith.constant dense<0.000000e+00> : vector<1xf32>
      %41 = vector.multi_reduction <add>, %40, %cst_20 [1, 2] : vector<1x8x1xf32> to vector<1xf32>
      %42 = vector.shape_cast %41 : vector<1xf32> to vector<1x1x1xf32>
      %43 = vector.extract %42[0, 0, 0] : f32 from vector<1x1x1xf32>
      %44 = vector.broadcast %43 : f32 to vector<1x8x128xf32>
      %c0_21 = arith.constant 0 : index
      %c0_22 = arith.constant 0 : index
      %c0_23 = arith.constant 0 : index
      %45 = vector.load %arg5[%c0_21, %c0_22, %c0_23] : memref<1x8x128xf32, #tpu.memory_space<vmem>>, vector<1x8x128xf32>
      tpu.vector_store %arg5[%c0_21, %c0_22, %c0_23], %44 {strides = array<i32>} : memref<1x8x128xf32, #tpu.memory_space<vmem>>, vector<1x8x128xf32>,
    } else {
    }
    return
  }
  func.func @transform_0(%arg0: i32, %arg1: i32) -> (i32, i32) {
    %c1_i32 = arith.constant 1 : i32
    %0 = arith.muli %arg0, %c1_i32 : i32
    %1 = arith.addi %0, %arg1 : i32
    %c0_i32 = arith.constant 0 : i32
    %2 = arith.minsi %1, %c0_i32 : i32
    %c0_i32_0 = arith.constant 0 : i32
    %c0_i32_1 = arith.constant 0 : i32
    return %2, %c0_i32_0 : i32, i32
  }
  func.func @transform_1(%arg0: i32, %arg1: i32) -> (i32, i32) {
    %c1_i32 = arith.constant 1 : i32
    %0 = arith.muli %arg0, %c1_i32 : i32
    %1 = arith.addi %0, %arg1 : i32
    %c0_i32 = arith.constant 0 : i32
    %2 = arith.minsi %1, %c0_i32 : i32
    %c0_i32_0 = arith.constant 0 : i32
    %c0_i32_1 = arith.constant 0 : i32
    return %2, %c0_i32_0 : i32, i32
  }
  func.func @transform_2(%arg0: i32, %arg1: i32) -> (i32, i32) {
    %c1_i32 = arith.constant 1 : i32
    %0 = arith.muli %arg0, %c1_i32 : i32
    %1 = arith.addi %0, %arg1 : i32
    %c0_i32 = arith.constant 0 : i32
    %2 = arith.minsi %1, %c0_i32 : i32
    %c0_i32_0 = arith.constant 0 : i32
    %c0_i32_1 = arith.constant 0 : i32
    return %2, %c0_i32_0 : i32, i32
  }
  func.func @transform_3(%arg0: i32, %arg1: i32) -> (i32, i32, i32) {
    %c0_i32 = arith.constant 0 : i32
    %c0_i32_0 = arith.constant 0 : i32
    %c0_i32_1 = arith.constant 0 : i32
    return %arg0, %c0_i32, %c0_i32_0 : i32, i32, i32
  }
}

</mosaic_0001>

<llo_original>
// kernel: tpu_custom_call.1
$region0: #{tpu_custom_call.1}
  #allocation0 [shape = 'u32[]', space=smem, size = 0x4, offset = 0x4, fixed_abs, tag = 'smem constant byte address 0x4 - core index']
  #allocation1 [shape = 'u32[144,128]{1,0:T(1,128)}', space=vmem, size = 0x12000, scoped, tag = 'internal scratch']
  #allocation2 [shape = 'f32[8,1]{1,0:T(8,128)}', space=vmem, size = 0x1000, scoped, tag = 'scratch operand']
  %s0 = inlined_call_operand.hbm [shape: f32[8,32], index: 0, kind: input, shape index: {}]
  %s1 = inlined_call_operand.hbm [shape: f32[8,32], index: 1, kind: input, shape index: {}]
  %s2 = inlined_call_operand.hbm [shape: f32[8,1], index: 2, kind: input, shape index: {}]
  %s3 = inlined_call_operand.hbm [shape: f32[1,8,128], index: 3, kind: output, shape index: {}]
  %s4 = sld [smem:[#allocation0]]
  $region42: #{tpu_custom_call.1} parent=0
    _
  %s6 = ssub.s32 1, %s4
  %s7 = scalar_select 0, %s6, %s4
  $region1: #{tpu_custom_call.1} parent=0
    #allocation3 [shape = 'u8[4096]{0}', space=vmem, size = 0x1000, scoped, tag = 'input window, operand 0, single buffered']
    #allocation4 [shape = 's32[1]{0}', space=sflag, size = 0x4, scoped, tag = 'scoped memory for tpu_custom_call.1']
    #allocation5 [shape = 's32[1]{0}', space=sflag, size = 0x4, scoped, tag = 'scoped memory for tpu_custom_call.1']
    #allocation6 [shape = 'u8[4096]{0}', space=vmem, size = 0x1000, scoped, tag = 'input window, operand 1, single buffered']
    #allocation7 [shape = 's32[1]{0}', space=sflag, size = 0x4, scoped, tag = 'scoped memory for tpu_custom_call.1']
    #allocation8 [shape = 'u8[4096]{0}', space=vmem, size = 0x1000, scoped, tag = 'input window, operand 2, single buffered']
    #allocation9 [shape = 'u8[4096]{0}', space=vmem, size = 0x1000, scoped, tag = 'output window, operand 0, single buffered']
    %8 = vsyncpa [#allocation4], 0
    %9 = vsyncpa [#allocation7], 0
    %10 = vsyncpa [#allocation5], 0
    // Predicated region
    $region2: #{tpu_custom_call.1} parent=1 // pred_check
      _
    $region3: #{tpu_custom_call.1} parent=1 // pred_check_branch
      %12 = sbr.rel (0) target = $region5
    $region4: #{tpu_custom_call.1} parent=1 // pred_region
      %s13 = sadd.s32 0, 0
      %p14 = scmp.lt.s32.totalorder %s13, 0
      %s15 = scalar_select %p14, %s13, 0
      %s17 = ssub.s32 128, 128
      %18 = vsyncadd [#allocation4], %s17
      %s19 = smul.addr %s15, 128
      %s20 = scalar_lea.hbm %s0, %s19
      %s22 = sshll.u32 [#allocation3], 4
      %s23 = int_to_ptr.vmem [resolvable:$true] %s22
      %25 = dma.hbm_to_vmem [thread:$0]  %s20, 128, %s23, [#allocation4]
    $region5: #{tpu_custom_call.1} parent=1 // pred_fallthru
      _
    // Predicated region
    $region6: #{tpu_custom_call.1} parent=1 // pred_check
      _
    $region7: #{tpu_custom_call.1} parent=1 // pred_check_branch
      %27 = sbr.rel (0) target = $region9
    $region8: #{tpu_custom_call.1} parent=1 // pred_region
      %s28 = sadd.s32 0, 0
      %p29 = scmp.lt.s32.totalorder %s28, 0
      %s30 = scalar_select %p29, %s28, 0
      %s32 = ssub.s32 128, 128
      %33 = vsyncadd [#allocation7], %s32
      %s34 = smul.addr %s30, 128
      %s35 = scalar_lea.hbm %s1, %s34
      %s37 = sshll.u32 [#allocation6], 4
      %s38 = int_to_ptr.vmem [resolvable:$true] %s37
      %40 = dma.hbm_to_vmem [thread:$0]  %s35, 128, %s38, [#allocation7]
    $region9: #{tpu_custom_call.1} parent=1 // pred_fallthru
      _
    // Predicated region
    $region10: #{tpu_custom_call.1} parent=1 // pred_check
      _
    $region11: #{tpu_custom_call.1} parent=1 // pred_check_branch
      %42 = sbr.rel (0) target = $region13
    $region12: #{tpu_custom_call.1} parent=1 // pred_region
      %s43 = sadd.s32 0, 0
      %p44 = scmp.lt.s32.totalorder %s43, 0
      %s45 = scalar_select %p44, %s43, 0
      %s47 = ssub.s32 128, 128
      %48 = vsyncadd [#allocation7], %s47
      %s49 = smul.addr %s45, 128
      %s50 = scalar_lea.hbm %s2, %s49
      %s52 = sshll.u32 [#allocation8], 4
      %s53 = int_to_ptr.vmem [resolvable:$true] %s52
      %55 = dma.hbm_to_vmem [thread:$0]  %s50, 128, %s53, [#allocation7]
    $region13: #{tpu_custom_call.1} parent=1 // pred_fallthru
      _
    // Predicated region
    $region14: #{tpu_custom_call.1} parent=1 // pred_check
      _
    $region15: #{tpu_custom_call.1} parent=1 // pred_check_branch
      %57 = sbr.rel (0) target = $region17
    $region16: #{tpu_custom_call.1} parent=1 // pred_region
      %58 = dma.done [#allocation4], 128
    $region17: #{tpu_custom_call.1} parent=1 // pred_fallthru
      _
    // Predicated region
    $region18: #{tpu_custom_call.1} parent=1 // pred_check
      _
    $region19: #{tpu_custom_call.1} parent=1 // pred_check_branch
      %60 = sbr.rel (0) target = $region21
    $region20: #{tpu_custom_call.1} parent=1 // pred_region
      %61 = dma.done [#allocation7], 128
    $region21: #{tpu_custom_call.1} parent=1 // pred_fallthru
      _
    // Predicated region
    $region22: #{tpu_custom_call.1} parent=1 // pred_check
      _
    $region23: #{tpu_custom_call.1} parent=1 // pred_check_branch
      %63 = sbr.rel (0) target = $region25
    $region24: #{tpu_custom_call.1} parent=1 // pred_region
      %64 = dma.done [#allocation7], 128
    $region25: #{tpu_custom_call.1} parent=1 // pred_fallthru
      _
    %s65 = sadd.s32 0, 0
    %p66 = scmp.lt.s32.totalorder %s65, 0
    %s67 = scalar_select %p66, %s65, 0
    %s68 = sadd.s32 0, 0
    %p69 = scmp.lt.s32.totalorder %s68, 0
    %s70 = scalar_select %p69, %s68, 0
    %s71 = sadd.s32 0, 0
    %p72 = scmp.lt.s32.totalorder %s71, 0
    %s73 = scalar_select %p72, %s71, 0
    %p74 = scmp.eq.s32.totalorder 0, 0
    // Predicated region
    $region26: #{tpu_custom_call.1} parent=1 // pred_check
      %p75 = pneg %p74
    $region27: #{tpu_custom_call.1} parent=1 // pred_check_branch
      %77 = sbr.rel (%p75) target = $region29
    $region28: #{tpu_custom_call.1} parent=1 // pred_region
      %vm78 = vcmask 7168
      %79 = vst.msk [vmem:[#allocation2] sm:$0xff] %vm78, 0.0
    $region29: #{tpu_custom_call.1} parent=1 // pred_fallthru
      _
    %v80 = vld [vmem:[#allocation3] sm:$0xff]
    %v81 = vld [vmem:[#allocation6] sm:$0xff]
    %v82 = vsub.f32 %v80, %v81
    %v83 = vadd.f32 %v82, 1e-06
    %v84 = vmul.f32 %v83, %v83
    %vm85 = vcmask 261120
    %v86 = vsel %vm85, %v84, 0.0
    %87 = vadd.xlane.f32.xlu0 %v86
    %v88 = vpop.xlane.xlu0 %87
    %v89 = vrsqrt.pop %v88
    %v90 = vmul.f32 %v88, %v89
    %vm91 = vcmp.eq.f32.partialorder %v88, inf
    %v92 = vsel %vm91, %v88, %v90
    %vm93 = vcmp.eq.f32.partialorder %v88, 0.0
    %v94 = vand.u32 %v88, 2147483648
    %v95 = vsel %vm93, %v94, %v92
    %v96 = vld [vmem:[#allocation8] sm:$0xff]
    %v97 = vsub.f32 2.0, %v95
    %v98 = vmax.f32 %v97, 0.0
    %v99 = vsub.f32 1.0, %v96
    %v100 = vmul.f32 %v99, %v88
    %v101 = vmul.f32 %v98, %v98
    %v102 = vmul.f32 %v96, %v101
    %v103 = vadd.f32 %v100, %v102
    %s104 = sadd.s32 0, 0
    %s105 = smul.u32 %s104, 8
    %v106 = vlaneseq
    %v107 = vshrl.u32 %v106, 7
    %v108 = vstv %s105
    %v109 = vadd.s32 %v107, %v108
    %vm110 = vcmp.lt.s32.totalorder %v109, 8
    %v111 = vsel %vm110, %v103, 0.0
    %v112 = vld [vmem:[#allocation2] sm:$0xff]
    %v113 = vadd.f32 %v112, %v111
    %vm114 = vcmask 7168
    %115 = vst.msk [vmem:[#allocation2] sm:$0xff] %vm114, %v113
    // Predicated region
    $region30: #{tpu_custom_call.1} parent=1 // pred_check
      %p116 = pneg %p74
    $region31: #{tpu_custom_call.1} parent=1 // pred_check_branch
      %118 = sbr.rel (%p116) target = $region33
    $region32: #{tpu_custom_call.1} parent=1 // pred_region
      %v119 = vld [vmem:[#allocation2] sm:$0xff]
      %v120 = vsel %vm114, %v119, 0.0
      %121 = vadd.xlane.f32.xlu0 %v120
      %v122 = vpop.xlane.xlu0 %121
      %v123 = vrot.slane %v122, 4
      %v124 = vadd.f32 %v122, %v123
      %v125 = vrot.slane %v124, 2
      %v126 = vadd.f32 %v124, %v125
      %v127 = vrot.slane %v126, 1
      %v128 = vadd.f32 %v126, %v127
      %s129 = vtos %v128
      %v130 = vstv %s129
      %131 = vst [vmem:[#allocation9] sm:$0xff] %v130
    $region33: #{tpu_custom_call.1} parent=1 // pred_fallthru
      _
    // Predicated region
    $region34: #{tpu_custom_call.1} parent=1 // pred_check
      _
    $region35: #{tpu_custom_call.1} parent=1 // pred_check_branch
      %133 = sbr.rel (0) target = $region37
    $region36: #{tpu_custom_call.1} parent=1 // pred_region
      %s135 = ssub.s32 128, 128
      %136 = vsyncadd [#allocation5], %s135
      %s138 = sshll.u32 [#allocation9], 4
      %s139 = int_to_ptr.vmem [resolvable:$true] %s138
      %141 = dma.vmem_to_hbm [thread:$0]  %s139, 128, %s3, [#allocation5]
    $region37: #{tpu_custom_call.1} parent=1 // pred_fallthru
      _
    // Predicated region
    $region38: #{tpu_custom_call.1} parent=1 // pred_check
      _
    $region39: #{tpu_custom_call.1} parent=1 // pred_check_branch
      %143 = sbr.rel (0) target = $region41
    $region40: #{tpu_custom_call.1} parent=1 // pred_region
      %144 = dma.done [#allocation5], 128
    $region41: #{tpu_custom_call.1} parent=1 // pred_fallthru
      _
    %145 = vsyncpa [#allocation4], 1
    %146 = vsyncpa [#allocation7], 1
    %147 = vsyncpa [#allocation5], 1

</llo_original>
